<compile_context>
chip_gen: v6e
topology: v6e:2x2x1
jax: 0.10.0
libtpu: 0.0.40
codegen_flags: <defaults>
</compile_context>

<pallas_src>
import jax
import jax.numpy as jnp
from jax.experimental import pallas as pl
from jax.experimental.pallas import tpu as pltpu

LANE = 128


def _round_up(n, m):
    return ((n + m - 1) // m) * m


def _ceil_div(a, b):
    return -(-a // b)


# ---------------------------------------------------------------------------
# Kernel 1: K-streamed x @ W1 partial sums (parallel K-split x K-reduction)
# ---------------------------------------------------------------------------
def layer1_kernel(x_ref, w1_ref, part_ref, acc_ref):
    k = pl.program_id(1)

    @pl.when(k == 0)
    def _init():
        acc_ref[...] = jnp.zeros_like(acc_ref)

    # (B, tk) @ (tk, H1) -> f32 accumulator (H1 kept unpadded).
    acc_ref[...] += jnp.dot(x_ref[...], w1_ref[...],
                            preferred_element_type=jnp.float32)

    @pl.when(k == pl.num_programs(1) - 1)
    def _flush():
        part_ref[...] = acc_ref[...]


# ---------------------------------------------------------------------------
# Kernel 2: combine partials + b1 + ReLU, then tiny L2/ReLU/L3 (+ biases)
# ---------------------------------------------------------------------------
def tail_kernel(part_ref, b1_ref, w2_ref, b2_ref, w3_ref, b3_ref, o_ref):
    h1 = jnp.sum(part_ref[...], axis=0) + b1_ref[...]
    h1 = jnp.maximum(h1, 0.0).astype(w2_ref.dtype)
    h2 = jnp.dot(h1, w2_ref[...], preferred_element_type=jnp.float32)
    h2 = jnp.maximum(h2 + b2_ref[...], 0.0).astype(w3_ref.dtype)
    h3 = jnp.dot(h2, w3_ref[...], preferred_element_type=jnp.float32)
    o_ref[...] = (h3 + b3_ref[...]).astype(o_ref.dtype)


# ---------------------------------------------------------------------------
# Static plan: generation-aware VMEM budget and K tiling (computed once)
# ---------------------------------------------------------------------------
def _vmem_budget_bytes():
    cap = 64 * 1024 * 1024  # conservative fallback (v7x-sized)
    try:
        info = pltpu.get_tpu_info()
        cap = int(getattr(info, "vmem_capacity_bytes", cap) or cap)
    except Exception:
        pass
    # ~48 MiB usable on 64 MiB parts (v7x), ~96 MiB on 128 MiB parts (v5e/v6e).
    return max(32 << 20, min(int(0.75 * cap), cap - (16 << 20)))


def make_plan(d_in, h1, h2, n_cls, batch, *, tk=None, n_split=2,
              compute_dtype=jnp.bfloat16):
    bpe = jnp.dtype(compute_dtype).itemsize
    sub = 16 if bpe == 2 else 8                  # sublane tile of the dtype
    h1_lanes = _round_up(h1, LANE)               # VMEM lane padding of W1 tile
    budget = _vmem_budget_bytes()
    slack = 4 << 20                              # acc / out / compiler scratch
    # Double-buffered per-K-step VMEM: W1 tile (tk, h1) + x tile (B, tk).
    per_tk_bytes = 2 * (h1_lanes + max(_round_up(batch, sub), sub)) * bpe
    tk_cap = max(LANE, ((budget - slack) // per_tk_bytes) // LANE * LANE)

    per_split_k = _round_up(_ceil_div(d_in, n_split), LANE)
    tk_req = 16384 if tk is None else tk         # 819200/2/16384 = 25 exact
    tk_val = max(LANE, min(_round_up(tk_req, LANE), tk_cap, per_split_k))
    steps = _ceil_div(per_split_k, tk_val)
    d_in_p = n_split * steps * tk_val

    return dict(d_in=d_in, h1=h1, h2=h2, n_cls=n_cls, batch=batch,
                n_split=n_split, tk=tk_val, steps=steps, d_in_p=d_in_p,
                n_out_p=_round_up(n_cls, LANE), compute_dtype=compute_dtype,
                vmem_limit=int(budget), bpe=bpe)


# ---------------------------------------------------------------------------
# One-time weight preparation (cast + pad) — hoisted out of the forward path
# ---------------------------------------------------------------------------
def prepare_params(params, plan):
    w1, b1, w2, b2, w3, b3 = params
    cd = plan["compute_dtype"]
    d_in, n_cls = plan["d_in"], plan["n_cls"]
    d_in_p, n_out_p = plan["d_in_p"], plan["n_out_p"]
    as2d = lambda b: jnp.asarray(b, jnp.float32).reshape(1, -1)

    w1_p = jnp.pad(w1.astype(cd), ((0, d_in_p - d_in), (0, 0)))  # K pad only
    w2_c = w2.astype(cd)
    w3_p = jnp.pad(w3.astype(cd), ((0, 0), (0, n_out_p - n_cls)))
    b3_p = jnp.pad(as2d(b3), ((0, 0), (0, n_out_p - n_cls)))
    return dict(w1=w1_p, b1=as2d(b1), w2=w2_c, b2=as2d(b2), w3=w3_p, b3=b3_p)


# ---------------------------------------------------------------------------
# Forward: encoder (identity) -> Flatten -> layer-1 kernel -> tail kernel
# ---------------------------------------------------------------------------
def cnn_clf_forward(x_nchw, prep, plan):
    cd = plan["compute_dtype"]
    B, d_in = plan["batch"], plan["d_in"]
    h1, h2 = plan["h1"], plan["h2"]
    d_in_p, n_out_p = plan["d_in_p"], plan["n_out_p"]
    tk, steps, n_split = plan["tk"], plan["steps"], plan["n_split"]
    bpe = plan["bpe"]

    assert x_nchw.shape[0] == B
    # encoded, _, _ = self.encoder(x)   (encoder modeled as identity)
    feat = x_nchw.reshape(B, -1).astype(cd)
    assert feat.shape[1] == d_in
    feat_p = jnp.pad(feat, ((0, 0), (0, d_in_p - d_in)))   # activation: tiny

    flops = 2 * B * d_in_p * h1
    bytes_accessed = (d_in_p * h1 * bpe + B * d_in_p * bpe
                      + n_split * B * h1 * 4)

    partials = pl.pallas_call(
        layer1_kernel,
        out_shape=jax.ShapeDtypeStruct((n_split, B, h1), jnp.float32),
        grid_spec=pltpu.PrefetchScalarGridSpec(
            num_scalar_prefetch=0,
            grid=(n_split, steps),
            in_specs=[
                # x: (B, tk) K-slice for this (split, step)
                pl.BlockSpec((B, tk), lambda j, k: (0, j * steps + k)),
                # W1: (tk, h1) K-slab, h1 left unpadded (full array dim)
                pl.BlockSpec((tk, h1), lambda j, k: (j * steps + k, 0)),
            ],
            out_specs=pl.BlockSpec((None, B, h1), lambda j, k: (j, 0, 0)),
            scratch_shapes=[pltpu.VMEM((B, h1), jnp.float32)],
        ),
        compiler_params=pltpu.CompilerParams(
            dimension_semantics=("parallel", "arbitrary"),
            vmem_limit_bytes=plan["vmem_limit"],
        ),
        cost_estimate=pl.CostEstimate(
            flops=flops, transcendentals=0, bytes_accessed=bytes_accessed),
    )(feat_p, prep["w1"])

    logits_p = pl.pallas_call(
        tail_kernel,
        out_shape=jax.ShapeDtypeStruct((B, n_out_p), jnp.float32),
        grid_spec=pltpu.PrefetchScalarGridSpec(
            num_scalar_prefetch=0,
            grid=(1,),
            in_specs=[
                pl.BlockSpec((n_split, B, h1), lambda i: (0, 0, 0)),
                pl.BlockSpec((1, h1), lambda i: (0, 0)),
                pl.BlockSpec((h1, h2), lambda i: (0, 0)),
                pl.BlockSpec((1, h2), lambda i: (0, 0)),
                pl.BlockSpec((h2, n_out_p), lambda i: (0, 0)),
                pl.BlockSpec((1, n_out_p), lambda i: (0, 0)),
            ],
            out_specs=pl.BlockSpec((B, n_out_p), lambda i: (0, 0)),
        ),
        compiler_params=pltpu.CompilerParams(
            dimension_semantics=("arbitrary",)),
    )(partials, prep["b1"], prep["w2"], prep["b2"], prep["w3"], prep["b3"])

    # Drop padded logit columns (padded classes are exactly 0 anyway).
    return logits_p[:, :plan["n_cls"]]


# ---------------------------------------------------------------------------
# Deterministic parameter construction (PyTorch-Linear-style uniform init)
# ---------------------------------------------------------------------------
def make_params(key, d_in, h1, h2, n_cls):
    def linear(key, fan_in, fan_out):
        kw, kb = jax.random.split(key)
        bound = 1.0 / jnp.sqrt(fan_in)
        w = jax.random.uniform(kw, (fan_in, fan_out), jnp.float32, -bound, bound)
        b = jax.random.uniform(kb, (1, fan_out), jnp.float32, -bound, bound)
        return w, b

    k1, k2, k3 = jax.random.split(key, 3)
    w1, b1 = linear(k1, d_in, h1)
    w2, b2 = linear(k2, h1, h2)
    w3, b3 = linear(k3, h2, n_cls)
    return (w1, b1, w2, b2, w3, b3)


# ---------------------------------------------------------------------------
# Pure-JAX reference mirroring the kernel's bf16 weight/activation quantization
# ---------------------------------------------------------------------------
def reference_forward(x_nchw, params, compute_dtype=jnp.bfloat16):
    w1, b1, w2, b2, w3, b3 = params
    B = x_nchw.shape[0]
    q = lambda a: a.astype(compute_dtype).astype(jnp.float32)
    f = q(x_nchw.reshape(B, -1))
    h = jnp.maximum(f @ q(w1) + b1.reshape(1, -1), 0.0)
    h = jnp.maximum(q(h) @ q(w2) + b2.reshape(1, -1), 0.0)
    return q(h) @ q(w3) + b3.reshape(1, -1)


if __name__ == "__main__":
    # Shapes consistent with the module:
    #   full scale:  encoded (B, 200, 64, 64) -> fc: 819200 -> 400 -> 200 -> 3
    #   scaled down: encoded (2,   4, 16, 16) -> fc: 1024   -> 32  -> 16  -> 3
    B, C, H, W = 2, 4, 16, 16
    HID1, HID2, N_CLS = 32, 16, 3
    D_IN = C * H * W

    key = jax.random.PRNGKey(0)
    kx, kp = jax.random.split(key)

    x = jax.random.normal(kx, (B, C, H, W), dtype=jnp.float32)  # NCHW
    params = make_params(kp, D_IN, HID1, HID2, N_CLS)

    # tk=256, n_split=2 -> grid (2, 2): exercises both the parallel K-split and
    # the K accumulator even at toy scale (full scale defaults: tk=16384 ->
    # grid (2, 25), exact, no K padding).
    plan = make_plan(D_IN, HID1, HID2, N_CLS, B, tk=256, n_split=2)
    prep = prepare_params(params, plan)      # one-time cast/pad (cached)

    out = cnn_clf_forward(x, prep, plan)
    out = jax.block_until_ready(out)

    ref = reference_forward(x, params)
    assert out.shape == (B, N_CLS)
    assert jnp.allclose(out, ref, atol=1e-2, rtol=1e-2)

    print("KERNEL_OK")
</pallas_src>

<mosaic_0001>
module attributes {stable_mosaic.version = 11 : i64} {
  func.func @layer1_kernel(%arg0: i32, %arg1: i32, %arg2: memref<2x256xbf16, #tpu.memory_space<vmem>>, %arg3: memref<256x32xbf16, #tpu.memory_space<vmem>>, %arg4: memref<1x2x32xf32, #tpu.memory_space<vmem>>, %arg5: memref<2x32xf32, #tpu.memory_space<vmem>>) attributes {dimension_semantics = [#tpu.dimension_semantics<parallel>, #tpu.dimension_semantics<arbitrary>], iteration_bounds = array<i64: 2, 2>, scalar_prefetch = 0 : i64, scratch_operands = 1 : i64, tpu.core_type = #tpu.core_type<tc>, window_params = [{transform_indices = @transform_0, window_bounds = array<i64: 2, 256>}, {transform_indices = @transform_1, window_bounds = array<i64: 256, 32>}, {transform_indices = @transform_2, window_bounds = array<i64: 1, 2, 32>}]} {
    %c0_i32 = arith.constant 0 : i32
    %0 = arith.cmpi eq, %arg1, %c0_i32 : i32
    %1 = arith.extui %0 : i1 to i32
    %c0_i32_0 = arith.constant 0 : i32
    %2 = arith.cmpi ne, %1, %c0_i32_0 : i32
    scf.if %2 {
      %cst_9 = arith.constant 0.000000e+00 : f32
      %12 = vector.broadcast %cst_9 : f32 to vector<2x32xf32>
      %c0_10 = arith.constant 0 : index
      %c0_11 = arith.constant 0 : index
      %13 = vector.load %arg5[%c0_10, %c0_11] : memref<2x32xf32, #tpu.memory_space<vmem>>, vector<2x32xf32>
      tpu.vector_store %arg5[%c0_10, %c0_11], %12 {strides = array<i32>} : memref<2x32xf32, #tpu.memory_space<vmem>>, vector<2x32xf32>,
    } else {
    }
    %c0 = arith.constant 0 : index
    %c0_1 = arith.constant 0 : index
    %3 = vector.load %arg5[%c0, %c0_1] : memref<2x32xf32, #tpu.memory_space<vmem>>, vector<2x32xf32>
    %c0_2 = arith.constant 0 : index
    %c0_3 = arith.constant 0 : index
    %4 = vector.load %arg2[%c0_2, %c0_3] : memref<2x256xbf16, #tpu.memory_space<vmem>>, vector<2x256xbf16>
    %c0_4 = arith.constant 0 : index
    %c0_5 = arith.constant 0 : index
    %5 = vector.load %arg3[%c0_4, %c0_5] : memref<256x32xbf16, #tpu.memory_space<vmem>>, vector<256x32xbf16>
    %cst = arith.constant dense<0.000000e+00> : vector<2x32xf32>
    %6 = tpu.matmul %4, %5, %cst {dimension_numbers = #tpu.dot_dimension_numbers<[1], [0], [0], [1], [0, 0, 1, 1], [], []>} : vector<2x256xbf16>, vector<256x32xbf16>, vector<2x32xf32> -> vector<2x32xf32>
    %7 = arith.addf %3, %6 : vector<2x32xf32>
    %c0_6 = arith.constant 0 : index
    %c0_7 = arith.constant 0 : index
    %8 = vector.load %arg5[%c0_6, %c0_7] : memref<2x32xf32, #tpu.memory_space<vmem>>, vector<2x32xf32>
    tpu.vector_store %arg5[%c0_6, %c0_7], %7 {strides = array<i32>} : memref<2x32xf32, #tpu.memory_space<vmem>>, vector<2x32xf32>,
    %c1_i32 = arith.constant 1 : i32
    %9 = arith.cmpi eq, %arg1, %c1_i32 : i32
    %10 = arith.extui %9 : i1 to i32
    %c0_i32_8 = arith.constant 0 : i32
    %11 = arith.cmpi ne, %10, %c0_i32_8 : i32
    scf.if %11 {
      %c0_9 = arith.constant 0 : index
      %c0_10 = arith.constant 0 : index
      %12 = vector.load %arg5[%c0_9, %c0_10] : memref<2x32xf32, #tpu.memory_space<vmem>>, vector<2x32xf32>
      %c0_11 = arith.constant 0 : index
      %c0_12 = arith.constant 0 : index
      %c0_13 = arith.constant 0 : index
      %13 = vector.load %arg4[%c0_11, %c0_12, %c0_13] : memref<1x2x32xf32, #tpu.memory_space<vmem>>, vector<1x2x32xf32>
      %14 = vector.shape_cast %13 : vector<1x2x32xf32> to vector<2x32xf32>
      %15 = vector.shape_cast %12 : vector<2x32xf32> to vector<1x2x32xf32>
      tpu.vector_store %arg4[%c0_11, %c0_12, %c0_13], %15 {strides = array<i32>} : memref<1x2x32xf32, #tpu.memory_space<vmem>>, vector<1x2x32xf32>,
    } else {
    }
    return
  }
  func.func @transform_0(%arg0: i32, %arg1: i32) -> (i32, i32) {
    %c2_i32 = arith.constant 2 : i32
    %0 = arith.muli %arg0, %c2_i32 : i32
    %1 = arith.addi %0, %arg1 : i32
    %c0_i32 = arith.constant 0 : i32
    %c0_i32_0 = arith.constant 0 : i32
    return %c0_i32, %1 : i32, i32
  }
  func.func @transform_1(%arg0: i32, %arg1: i32) -> (i32, i32) {
    %c2_i32 = arith.constant 2 : i32
    %0 = arith.muli %arg0, %c2_i32 : i32
    %1 = arith.addi %0, %arg1 : i32
    %c0_i32 = arith.constant 0 : i32
    %c0_i32_0 = arith.constant 0 : i32
    return %1, %c0_i32 : i32, i32
  }
  func.func @transform_2(%arg0: i32, %arg1: i32) -> (i32, i32, i32) {
    %c0_i32 = arith.constant 0 : i32
    %c0_i32_0 = arith.constant 0 : i32
    %c0_i32_1 = arith.constant 0 : i32
    return %arg0, %c0_i32, %c0_i32_0 : i32, i32, i32
  }
}

</mosaic_0001>

<llo_original>
// kernel: tpu_custom_call.1
$region0: #{tpu_custom_call.1}
  #allocation0 [shape = 'u32[]', space=smem, size = 0x4, offset = 0x4, fixed_abs, tag = 'smem constant byte address 0x4 - core index']
  #allocation1 [shape = 'u32[144,128]{1,0:T(1,128)}', space=vmem, size = 0x12000, scoped, tag = 'internal scratch']
  #allocation2 [shape = 'f32[2,32]{1,0:T(2,128)}', space=vmem, size = 0x400, scoped, tag = 'scratch operand']
  %s0 = inlined_call_operand.vmem [shape: bf16[2,1024], index: 0, kind: input, shape index: {}]
  %s1 = inlined_call_operand.vmem [shape: bf16[1024,32], index: 1, kind: input, shape index: {}]
  %s2 = inlined_call_operand.hbm [shape: f32[2,2,32], index: 2, kind: output, shape index: {}]
  %s3 = sld [smem:[#allocation0]]
  $region49: #{tpu_custom_call.1} parent=0
    _
  %s5 = ssub.s32 1, %s3
  %s6 = scalar_select 0, %s5, %s3
  $region1: #{tpu_custom_call.1} parent=0
    #allocation3 [shape = 'u8[2048]{0}', space=vmem, size = 0x800, scoped, tag = 'output window, operand 0']
    #allocation4 [shape = 's32[2]{0}', space=sflag, size = 0x8, scoped, tag = 'scoped memory for tpu_custom_call.1']
    %7 = vsyncpa [#allocation4], 0
    %s8 = scalar_lea.sflag [#allocation4], 1
    %9 = vsyncpa %s8, 0
    loop: start=0, step=1, limit=6
    $region2: #{tpu_custom_call.1} parent=1 // loop_pre_header
      _
    $region3: #{tpu_custom_call.1} parent=1 // loop_header
      %s11 = sphi 0, %s15
      %p12 = scmp.ge.s32.totalorder %s11, 6
      %s18 = sphi 0, %s30
      %s19 = sphi 0, %s26
      %s20 = sphi 0, %s18
      %s21 = sphi 0, %s19
      %s22 = sphi 0, %s20
      %s23 = sphi 0, %s21
      %s37 = sphi 0, %s39
      %s40 = sphi 0, %s37
      %s41 = sphi 0, %s40
      %s57 = sphi 0, %s41
      %s67 = sphi 0, %s69
      %s70 = sphi 0, %s67
      %s71 = sphi 0, %s70
      %s87 = sphi 0, %s71
      %s93 = sphi 0, %s95
      %s96 = sphi 0, %s93
      %s97 = sphi 0, %s96
      %s113 = sphi 0, %s97
    $region4: #{tpu_custom_call.1} parent=1 // loop_header_branch
      %14 = sbr.rel (%p12) target = $region8
    $region5: #{tpu_custom_call.1} parent=1 // loop_body
      %s16 = ssub.s32 %s11, 1
      %s17 = ssub.s32 %s11, 2
      %s24 = sadd.s32 1, %s19
      %p25 = scmp.ge.s32.totalorder %s24, 2
      %s26 = scalar_select %p25, 0, %s24
      %s27 = sadd.s32 1, %s18
      %s28 = scalar_select %p25, %s27, %s18
      %p29 = scmp.ge.s32.totalorder %s28, 2
      %s30 = scalar_select %p29, 0, %s28
      %s31 = smul.u32 %s18, 2
      %s32 = sadd.s32 %s31, %s19
      %s33 = smul.u32 %s30, 2
      %s34 = sadd.s32 %s33, %s26
      %s35 = ssub.s32 %s32, %s34
      %p36 = scmp.eq.s32.totalorder %s35, 0
      %s38 = sadd.s32 %s37, 1
      %s39 = scalar_select %p36, %s37, %s38
      %p42 = pneg %p36
      %p43 = scmp.eq.s32.totalorder %s11, 3
      %p44 = por %p42, %p43
      %p45 = scmp.ne.s32.totalorder %s37, %s40
      %p46 = scmp.eq.s32.totalorder %s11, 0
      %p47 = por %p45, %p46
      %p48 = scmp.ne.s32.totalorder %s37, %s40
      %p49 = scmp.eq.s32.totalorder %s16, 3
      %p50 = por %p48, %p49
      %p51 = scmp.ne.s32.totalorder %s40, %s41
      %p52 = scmp.eq.s32.totalorder %s16, 0
      %p53 = por %p51, %p52
      %p54 = scmp.ne.s32.totalorder %s40, %s41
      %p55 = scmp.eq.s32.totalorder %s17, 3
      %p56 = por %p54, %p55
      %p58 = scmp.ne.s32.totalorder %s41, %s57
      %p59 = scmp.eq.s32.totalorder %s17, 0
      %p60 = por %p58, %p59
      %s61 = smul.u32 %s18, 2
      %s62 = sadd.s32 %s61, %s19
      %s63 = smul.u32 %s30, 2
      %s64 = sadd.s32 %s63, %s26
      %s65 = ssub.s32 %s62, %s64
      %p66 = scmp.eq.s32.totalorder %s65, 0
      %s68 = sadd.s32 %s67, 1
      %s69 = scalar_select %p66, %s67, %s68
      %p72 = pneg %p66
      %p73 = scmp.eq.s32.totalorder %s11, 3
      %p74 = por %p72, %p73
      %p75 = scmp.ne.s32.totalorder %s67, %s70
      %p76 = scmp.eq.s32.totalorder %s11, 0
      %p77 = por %p75, %p76
      %p78 = scmp.ne.s32.totalorder %s67, %s70
      %p79 = scmp.eq.s32.totalorder %s16, 3
      %p80 = por %p78, %p79
      %p81 = scmp.ne.s32.totalorder %s70, %s71
      %p82 = scmp.eq.s32.totalorder %s16, 0
      %p83 = por %p81, %p82
      %p84 = scmp.ne.s32.totalorder %s70, %s71
      %p85 = scmp.eq.s32.totalorder %s17, 3
      %p86 = por %p84, %p85
      %p88 = scmp.ne.s32.totalorder %s71, %s87
      %p89 = scmp.eq.s32.totalorder %s17, 0
      %p90 = por %p88, %p89
      %s91 = ssub.s32 %s18, %s30
      %p92 = scmp.eq.s32.totalorder %s91, 0
      %s94 = sadd.s32 %s93, 1
      %s95 = scalar_select %p92, %s93, %s94
      %p98 = pneg %p92
      %p99 = scmp.eq.s32.totalorder %s11, 3
      %p100 = por %p98, %p99
      %p101 = scmp.ne.s32.totalorder %s93, %s96
      %p102 = scmp.eq.s32.totalorder %s11, 0
      %p103 = por %p101, %p102
      %p104 = scmp.ne.s32.totalorder %s93, %s96
      %p105 = scmp.eq.s32.totalorder %s16, 3
      %p106 = por %p104, %p105
      %p107 = scmp.ne.s32.totalorder %s96, %s97
      %p108 = scmp.eq.s32.totalorder %s16, 0
      %p109 = por %p107, %p108
      %p110 = scmp.ne.s32.totalorder %s96, %s97
      %p111 = scmp.eq.s32.totalorder %s17, 3
      %p112 = por %p110, %p111
      %p114 = scmp.ne.s32.totalorder %s97, %s113
      %p115 = scmp.eq.s32.totalorder %s17, 0
      %p116 = por %p114, %p115
      %p117 = scmp.le.s32.totalorder 1, %s11
      %p118 = scmp.lt.s32.totalorder %s11, 5
      %p119 = pnand %p117, %p118
      %p120 = pneg %p119
      // Predicated region
      $region9: #{tpu_custom_call.1} parent=5 // pred_check
        _
      $region10: #{tpu_custom_call.1} parent=5 // pred_check_branch
        %122 = sbr.rel (%p119) target = $region12
      $region11: #{tpu_custom_call.1} parent=5 // pred_region
        %s123 = ssub.s32 %s11, 1
      $region12: #{tpu_custom_call.1} parent=5 // pred_fallthru
        _
      %p124 = scmp.lt.s32.totalorder %s11, 4
      // Predicated region
      $region13: #{tpu_custom_call.1} parent=5 // pred_check
        %p125 = pneg %p124
      $region14: #{tpu_custom_call.1} parent=5 // pred_check_branch
        %127 = sbr.rel (%p125) target = $region16
      $region15: #{tpu_custom_call.1} parent=5 // pred_region
        // Predicated region
        $region17: #{tpu_custom_call.1} parent=15 // pred_check
          %p128 = pneg %p47
        $region18: #{tpu_custom_call.1} parent=15 // pred_check_branch
          %130 = sbr.rel (%p128) target = $region20
        $region19: #{tpu_custom_call.1} parent=15 // pred_region
          %s131 = smul.u32 %s18, 2
          %s132 = sadd.s32 %s131, %s19
          %s133 = smul.u32 2, %s132
          %p134 = scmp.lt.s32.totalorder %s133, 7
          %s135 = scalar_select %p134, %s133, 7
          %s136 = scalar_lea.vmem %s0, %s135
          %s137 = smul.u32 %s18, 2
          %s138 = sadd.s32 %s137, %s19
          %s139 = smul.u32 2, %s138
        $region20: #{tpu_custom_call.1} parent=15 // pred_fallthru
          _
        // Predicated region
        $region21: #{tpu_custom_call.1} parent=15 // pred_check
          %p140 = pneg %p77
        $region22: #{tpu_custom_call.1} parent=15 // pred_check_branch
          %142 = sbr.rel (%p140) target = $region24
        $region23: #{tpu_custom_call.1} parent=15 // pred_region
          %s143 = smul.u32 %s18, 2
          %s144 = sadd.s32 %s143, %s19
          %s145 = smul.u32 32, %s144
          %p146 = scmp.lt.s32.totalorder %s145, 127
          %s147 = scalar_select %p146, %s145, 127
          %s148 = smul.addr %s147, 4
          %s149 = scalar_lea.vmem %s1, %s148
          %s150 = smul.u32 %s18, 2
          %s151 = sadd.s32 %s150, %s19
          %s152 = smul.u32 32, %s151
        $region24: #{tpu_custom_call.1} parent=15 // pred_fallthru
          _
      $region16: #{tpu_custom_call.1} parent=5 // pred_fallthru
        _
      %p153 = scmp.le.s32.totalorder 1, %s11
      %p154 = scmp.lt.s32.totalorder %s11, 5
      %p155 = pnand %p153, %p154
      %p156 = pneg %p155
      // Predicated region
      $region25: #{tpu_custom_call.1} parent=5 // pred_check
        _
      $region26: #{tpu_custom_call.1} parent=5 // pred_check_branch
        %158 = sbr.rel (%p155) target = $region28
      $region27: #{tpu_custom_call.1} parent=5 // pred_region
        %s159 = ssub.s32 %s11, 1
        %s160 = smul.u32 %s20, 2
        %s161 = sadd.s32 %s160, %s21
        %s162 = smul.u32 2, %s161
        %p163 = scmp.lt.s32.totalorder %s162, 7
        %s164 = scalar_select %p163, %s162, 7
        %s165 = scalar_lea.vmem %s0, %s164
        %p166 = pneg %p53
        %p167 = pneg %p50
        %s168 = smul.u32 %s20, 2
        %s169 = sadd.s32 %s168, %s21
        %s170 = smul.u32 32, %s169
        %p171 = scmp.lt.s32.totalorder %s170, 127
        %s172 = scalar_select %p171, %s170, 127
        %s173 = smul.addr %s172, 4
        %s174 = scalar_lea.vmem %s1, %s173
        %p175 = pneg %p83
        %p176 = pneg %p80
        %p177 = pneg %p109
        %p178 = pneg %p106
        %s179 = sand.u32 %s96, 1
        %s180 = scalar_lea.sflag [#allocation4], %s179
        %s181 = sand.u32 %s96, 1
        %s182 = smul.addr %s181, 2
        %s183 = scalar_lea.vmem [#allocation3], %s182
        %s184 = smul.u32 %s20, 2
        %s185 = sadd.s32 %s184, %s21
        %s186 = smul.u32 2, %s185
        %p187 = scmp.lt.s32.totalorder %s186, 7
        %s188 = scalar_select %p187, %s186, 7
        %s189 = scalar_lea.vmem %s0, %s188
        %s190 = smul.u32 %s20, 2
        %s191 = sadd.s32 %s190, %s21
        %s192 = smul.u32 2, %s191
        %s193 = smul.u32 %s20, 2
        %s194 = sadd.s32 %s193, %s21
        %s195 = smul.u32 32, %s194
        %p196 = scmp.lt.s32.totalorder %s195, 127
        %s197 = scalar_select %p196, %s195, 127
        %s198 = smul.addr %s197, 4
        %s199 = scalar_lea.vmem %s1, %s198
        %s200 = smul.u32 %s20, 2
        %s201 = sadd.s32 %s200, %s21
        %s202 = smul.u32 32, %s201
        %p204 = scmp.eq.s32.totalorder %s21, 0
        // Predicated region
        $region29: #{tpu_custom_call.1} parent=27 // pred_check
          %p205 = pneg %p204
        $region30: #{tpu_custom_call.1} parent=27 // pred_check_branch
          %207 = sbr.rel (%p205) target = $region32
        $region31: #{tpu_custom_call.1} parent=27 // pred_region
          %vm208 = vcmask 254976
          %209 = vst.msk [vmem:[#allocation2] sm:$0x3] %vm208, 0.0
        $region32: #{tpu_custom_call.1} parent=27 // pred_fallthru
          _
        %v210 = vld [vmem:[#allocation2] sm:$0x3]
        %v211 = vld [vmem:[%s189] sm:$0x3]
        %v212 = vld [vmem:[%s199] sm:$0xf]
        %v213 = vld [vmem:[%s199 + $0x4] sm:$0xf]
        %v214 = vld [vmem:[%s199 + $0x8] sm:$0xf]
        %v215 = vld [vmem:[%s199 + $0xc] sm:$0xf]
        %v216 = vld [vmem:[%s199 + $0x10] sm:$0xf]
        %v217 = vld [vmem:[%s199 + $0x14] sm:$0xf]
        %v218 = vld [vmem:[%s199 + $0x18] sm:$0xf]
        %v219 = vld [vmem:[%s199 + $0x1c] sm:$0xf]
        %v220 = vld [vmem:[%s199 + $0x20] sm:$0xf]
        %v221 = vld [vmem:[%s199 + $0x24] sm:$0xf]
        %v222 = vld [vmem:[%s199 + $0x28] sm:$0xf]
        %v223 = vld [vmem:[%s199 + $0x2c] sm:$0xf]
        %v224 = vld [vmem:[%s199 + $0x30] sm:$0xf]
        %v225 = vld [vmem:[%s199 + $0x34] sm:$0xf]
        %v226 = vld [vmem:[%s199 + $0x38] sm:$0xf]
        %v227 = vld [vmem:[%s199 + $0x3c] sm:$0xf]
        %v228 = vld [vmem:[%s199 + $0x40] sm:$0xf]
        %v229 = vld [vmem:[%s199 + $0x44] sm:$0xf]
        %v230 = vld [vmem:[%s199 + $0x48] sm:$0xf]
        %v231 = vld [vmem:[%s199 + $0x4c] sm:$0xf]
        %v232 = vld [vmem:[%s199 + $0x50] sm:$0xf]
        %v233 = vld [vmem:[%s199 + $0x54] sm:$0xf]
        %v234 = vld [vmem:[%s199 + $0x58] sm:$0xf]
        %v235 = vld [vmem:[%s199 + $0x5c] sm:$0xf]
        %v236 = vld [vmem:[%s199 + $0x60] sm:$0xf]
        %v237 = vld [vmem:[%s199 + $0x64] sm:$0xf]
        %v238 = vld [vmem:[%s199 + $0x68] sm:$0xf]
        %v239 = vld [vmem:[%s199 + $0x6c] sm:$0xf]
        %v240 = vld [vmem:[%s199 + $0x70] sm:$0xf]
        %v241 = vld [vmem:[%s199 + $0x74] sm:$0xf]
        %v242 = vld [vmem:[%s199 + $0x78] sm:$0xf]
        %v243 = vld [vmem:[%s199 + $0x7c] sm:$0xf]
        %v246 = vunpack.c.l.s4 1966171168
        %v247 = vunpack.c.0.s8 %v246
        %v248 = vlaneseq
        %v249 = vshrl.u32 %v248, 7
        %v250 = vsub.s32 %v247, %v249
        %v251 = vrot.slane %v211, %v250
        %v252 = vcombine.high %v251, %v251
        %v254 = vunpack.c.l.s4 1966171168
        %v255 = vunpack.c.0.s8 %v254
        %v256 = vlaneseq
        %v257 = vshrl.u32 %v256, 7
        %v258 = vsub.s32 %v255, %v257
        %v259 = vrot.slane %v251, %v258
        %v261 = vunpack.c.l.s4 1966171168
        %v262 = vunpack.c.0.s8 %v261
        %v263 = vlaneseq
        %v264 = vshrl.u32 %v263, 7
        %v265 = vsub.s32 %v262, %v264
        %v266 = vrot.slane %v252, %v265
        %v301 = vunpack.c.l.b16 %v212
        %v302 = vunpack.c.l.b16 %v213
        %v303 = vunpack.c.l.b16 %v214
        %v304 = vunpack.c.l.b16 %v215
        %v305 = vunpack.c.l.b16 %v216
        %v306 = vunpack.c.l.b16 %v217
        %v307 = vunpack.c.l.b16 %v218
        %v308 = vunpack.c.l.b16 %v219
        %v309 = vunpack.c.l.b16 %v220
        %v310 = vunpack.c.l.b16 %v221
        %v311 = vunpack.c.l.b16 %v222
        %v312 = vunpack.c.l.b16 %v223
        %v313 = vunpack.c.l.b16 %v224
        %v314 = vunpack.c.l.b16 %v225
        %v315 = vunpack.c.l.b16 %v226
        %v316 = vunpack.c.l.b16 %v227
        %v317 = vunpack.c.l.b16 %v228
        %v318 = vunpack.c.l.b16 %v229
        %v319 = vunpack.c.l.b16 %v230
        %v320 = vunpack.c.l.b16 %v231
        %v321 = vunpack.c.l.b16 %v232
        %v322 = vunpack.c.l.b16 %v233
        %v323 = vunpack.c.l.b16 %v234
        %v324 = vunpack.c.l.b16 %v235
        %v325 = vunpack.c.l.b16 %v236
        %v326 = vunpack.c.l.b16 %v237
        %v327 = vunpack.c.l.b16 %v238
        %v328 = vunpack.c.l.b16 %v239
        %v329 = vunpack.c.l.b16 %v240
        %v330 = vunpack.c.l.b16 %v241
        %v331 = vunpack.c.l.b16 %v242
        %v332 = vunpack.c.l.b16 %v243
        %v333 = vpack.c.b16 %v302, %v301
        %v334 = vpack.c.b16 %v304, %v303
        %v335 = vpack.c.b16 %v306, %v305
        %v336 = vpack.c.b16 %v308, %v307
        %v337 = vpack.c.b16 %v310, %v309
        %v338 = vpack.c.b16 %v312, %v311
        %v339 = vpack.c.b16 %v314, %v313
        %v340 = vpack.c.b16 %v316, %v315
        %v341 = vpack.c.b16 %v318, %v317
        %v342 = vpack.c.b16 %v320, %v319
        %v343 = vpack.c.b16 %v322, %v321
        %v344 = vpack.c.b16 %v324, %v323
        %v345 = vpack.c.b16 %v326, %v325
        %v346 = vpack.c.b16 %v328, %v327
        %v347 = vpack.c.b16 %v330, %v329
        %v348 = vpack.c.b16 %v332, %v331
        %365 = vmatprep.subr.bf16.mxu0 0
        %366 = vmatpush1.bf16.msra.mxu0 %v340
        %367 = vmatprep.subr.bf16.mxu0 0
        %368 = vmatpush1.bf16.msra.mxu0 %v339
        %369 = vmatprep.subr.bf16.mxu0 0
        %370 = vmatpush1.bf16.msra.mxu0 %v338
        %371 = vmatprep.subr.bf16.mxu0 0
        %372 = vmatpush1.bf16.msra.mxu0 %v337
        %373 = vmatprep.subr.bf16.mxu0 0
        %374 = vmatpush1.bf16.msra.mxu0 %v336
        %375 = vmatprep.subr.bf16.mxu0 0
        %376 = vmatpush1.bf16.msra.mxu0 %v335
        %377 = vmatprep.subr.bf16.mxu0 0
        %378 = vmatpush1.bf16.msra.mxu0 %v334
        %379 = vmatprep.subr.bf16.mxu0 0
        %380 = vmatpush1.bf16.msra.mxu0 %v333
        %381 = vmatprep.subr.bf16.mxu0 0
        %382 = vmatpush2.bf16.msra.mxu0 %v348
        %383 = vmatprep.subr.bf16.mxu0 0
        %384 = vmatpush2.bf16.msra.mxu0 %v347
        %385 = vmatprep.subr.bf16.mxu0 0
        %386 = vmatpush2.bf16.msra.mxu0 %v346
        %387 = vmatprep.subr.bf16.mxu0 0
        %388 = vmatpush2.bf16.msra.mxu0 %v345
        %389 = vmatprep.subr.bf16.mxu0 0
        %390 = vmatpush2.bf16.msra.mxu0 %v344
        %391 = vmatprep.subr.bf16.mxu0 0
        %392 = vmatpush2.bf16.msra.mxu0 %v343
        %393 = vmatprep.subr.bf16.mxu0 0
        %394 = vmatpush2.bf16.msra.mxu0 %v342
        %395 = vmatprep.subr.bf16.mxu0 0
        %396 = vmatpush2.bf16.msra.mxu0 %v341
        %397 = vmatprep.mubr.bf16.mxu0 %v266
        %398 = vmatmul.mubr.bf16.gmra.mxu0 %v259
        %v399 = vpop.f32.mrf.mxu0
        %v400 = vadd.f32 0.0, %v399
        %v401 = vpop.f32.mrf.mxu0
        %v402 = vpop.f32.mrf.mxu0
        %v403 = vpop.f32.mrf.mxu0
        %404 = vdwg.mxu0
        %v405 = vadd.f32 %v210, %v400
        %vm406 = vcmask 254976
        %407 = vst.msk [vmem:[#allocation2] sm:$0x3] %vm406, %v405
        %p408 = scmp.eq.s32.totalorder %s21, 1
        // Predicated region
        $region33: #{tpu_custom_call.1} parent=27 // pred_check
          %p409 = pneg %p408
        $region34: #{tpu_custom_call.1} parent=27 // pred_check_branch
          %411 = sbr.rel (%p409) target = $region36
        $region35: #{tpu_custom_call.1} parent=27 // pred_region
          %v412 = vld [vmem:[#allocation2] sm:$0x3]
          %413 = vst.msk [vmem:[%s183] sm:$0x3] %vm406, %v412
        $region36: #{tpu_custom_call.1} parent=27 // pred_fallthru
          _
        %s414 = sand.u32 %s96, 1
        %s415 = scalar_lea.sflag [#allocation4], %s414
        %s416 = sand.u32 %s96, 1
        %s417 = smul.addr %s416, 2
        %s418 = scalar_lea.vmem [#allocation3], %s417
        // Predicated region
        $region37: #{tpu_custom_call.1} parent=27 // pred_check
          %p419 = pneg %p106
        $region38: #{tpu_custom_call.1} parent=27 // pred_check_branch
          %421 = sbr.rel (%p419) target = $region40
        $region39: #{tpu_custom_call.1} parent=27 // pred_region
          %s423 = ssub.s32 32, 32
          %424 = vsyncadd %s415, %s423
          %s425 = smul.addr %s20, 32
          %s426 = scalar_lea.hbm %s2, %s425
          %s428 = sshll.u32 %s418, 4
          %s429 = int_to_ptr.vmem [resolvable:$true] %s428
          %431 = dma.vmem_to_hbm [thread:$0]  %s429, 32, %s426, %s415
        $region40: #{tpu_custom_call.1} parent=27 // pred_fallthru
          _
      $region28: #{tpu_custom_call.1} parent=5 // pred_fallthru
        _
      %p432 = scmp.le.s32.totalorder 2, %s11
      // Predicated region
      $region41: #{tpu_custom_call.1} parent=5 // pred_check
        %p433 = pneg %p432
      $region42: #{tpu_custom_call.1} parent=5 // pred_check_branch
        %435 = sbr.rel (%p433) target = $region44
      $region43: #{tpu_custom_call.1} parent=5 // pred_region
        %s436 = ssub.s32 %s11, 2
        // Predicated region
        $region45: #{tpu_custom_call.1} parent=43 // pred_check
          %p437 = pneg %p112
        $region46: #{tpu_custom_call.1} parent=43 // pred_check_branch
          %439 = sbr.rel (%p437) target = $region48
        $region47: #{tpu_custom_call.1} parent=43 // pred_region
          %s440 = sand.u32 %s97, 1
          %s441 = scalar_lea.sflag [#allocation4], %s440
          %s442 = sand.u32 %s97, 1
          %s443 = smul.addr %s442, 2
          %s444 = scalar_lea.vmem [#allocation3], %s443
          %445 = dma.done %s441, 32
        $region48: #{tpu_custom_call.1} parent=43 // pred_fallthru
          _
      $region44: #{tpu_custom_call.1} parent=5 // pred_fallthru
        _
    $region6: #{tpu_custom_call.1} parent=1 // loop_footer
      %s15 = sadd.s32 1, %s11
    $region7: #{tpu_custom_call.1} parent=1 // loop_footer_branch
      %10 = sbr.rel target = $region3
    $region8: #{tpu_custom_call.1} parent=1 // loop_exit
      _
    %446 = vsyncpa [#allocation4], 1
    %s447 = scalar_lea.sflag [#allocation4], 1
    %448 = vsyncpa %s447, 1

</llo_original>
